<compile_context>
chip_gen: v6e
topology: v6e:2x2x1
jax: 0.10.0
libtpu: 0.0.40
codegen_flags: <defaults>
</compile_context>

<pallas_src>
import jax
import jax.numpy as jnp
from jax import lax
from jax.experimental import pallas as pl
from jax.experimental.pallas import tpu as pltpu

LANES = 128
SUBLANES = 8
TARGET_BLOCK_BYTES = 6 * 1024 * 1024     # combined bytes of all operand blocks per step
MAX_ROWS_PER_BLOCK = 8192
_VMEM_LIMIT = 32 * 1024 * 1024           # safe on v5e/v6e/v7x for our <=16 MiB of buffers


def _cdiv(a, b):
    return -(-a // b)


def _flatten_lanes(a):
    """Flatten to (rows, LANES). Pads with zeros only when n % LANES != 0."""
    flat = a.reshape(-1)
    n = flat.shape[0]
    rem = n % LANES
    if rem:
        flat = jnp.pad(flat, (0, LANES - rem))
    return flat.reshape(-1, LANES)


def _sublane_multiple(*dtypes):
    """Second-minor block multiple required by the narrowest operand dtype."""
    m = SUBLANES
    for dt in dtypes:
        m = max(m, SUBLANES * (4 // jnp.dtype(dt).itemsize))
    return m


def _row_tile(rows, mult, itemsizes):
    """Row block: ~TARGET_BLOCK_BYTES of combined operand data, tiling-legal."""
    bytes_per_row = LANES * sum(int(s) for s in itemsizes)
    tm = min(MAX_ROWS_PER_BLOCK, max(mult, TARGET_BLOCK_BYTES // bytes_per_row))
    tm = max(mult, (tm // mult) * mult)
    if rows >= mult:
        return min(tm, (rows // mult) * mult)
    return rows        # block equals the full (small) array dim -> allowed


def _acc_rows(tm):
    """Accumulator rows: wide enough for VPU ILP, divides the row block."""
    for r in (64, 32, 16, 8):
        if tm % r == 0:
            return r
    return tm


def _make_sum_kernel(tm, acc_rows, rows_valid, bpc, has_weight, needs_mask):
    """sum(|x - y| [* w]) accumulated into a resident (acc_rows, LANES) block."""
    n_full = rows_valid // tm          # logical blocks that need no masking

    def _fold(d):
        # Elementwise VPU adds only; the cross-lane reduce happens once in the
        # wrapper over the tiny partial-sum output.
        return jnp.sum(d.reshape(-1, acc_rows, LANES), axis=0)

    def kernel(*refs):
        if has_weight:
            x_ref, y_ref, w_ref, acc_ref = refs
        else:
            x_ref, y_ref, acc_ref = refs

        i = pl.program_id(1)

        @pl.when(i == 0)
        def _init():
            acc_ref[...] = jnp.zeros_like(acc_ref)

        d = jnp.abs(x_ref[...].astype(jnp.float32) -
                    y_ref[...].astype(jnp.float32))
        if has_weight:
            d = d * w_ref[...].astype(jnp.float32)

        if needs_mask:
            blk = pl.program_id(0) * bpc + i   # logical (unclamped) block index

            @pl.when(blk < n_full)             # interior block: no mask cost
            def _full():
                acc_ref[...] += _fold(d)

            @pl.when(blk >= n_full)            # ragged / phantom tail block
            def _tail():
                row_ids = blk * tm + lax.broadcasted_iota(jnp.int32, (tm, 1), 0)
                acc_ref[...] += _fold(jnp.where(row_ids < rows_valid, d, 0.0))
        else:
            acc_ref[...] += _fold(d)

    return kernel


def _make_elem_kernel(has_weight, scale_factor, lowest_loss_value):
    """Elementwise |x - y| [* w] with scale/floor fused (reduction='none')."""

    def kernel(*refs):
        if has_weight:
            x_ref, y_ref, w_ref, o_ref = refs
        else:
            x_ref, y_ref, o_ref = refs
        d = jnp.abs(x_ref[...].astype(jnp.float32) -
                    y_ref[...].astype(jnp.float32))
        if has_weight:
            d = d * w_ref[...].astype(jnp.float32)
        if scale_factor != 1.0:
            d = d * jnp.float32(scale_factor)
        if lowest_loss_value is not None:
            llv = jnp.float32(lowest_loss_value)
            d = jnp.abs(d - llv) + llv
        o_ref[...] = d.astype(o_ref.dtype)

    return kernel


def l1_loss(x_src, x_tgt, weight=None, scale_factor=1.0, reduction="mean",
            lowest_loss_value=None):
    assert x_src.shape == x_tgt.shape, "invalid shape of x_src or x_tgt"
    orig_shape = x_src.shape
    n_elems = x_src.size
    has_weight = weight is not None

    # Keep original dtypes; the cast to f32 happens inside the kernel.
    x2d = _flatten_lanes(x_src)
    y2d = _flatten_lanes(x_tgt)
    operands = [x2d, y2d]
    if has_weight:
        w_full = jnp.broadcast_to(weight, orig_shape)
        operands.append(_flatten_lanes(w_full))

    rows = x2d.shape[0]
    in_dtypes = [op.dtype for op in operands]
    in_sizes = [jnp.dtype(dt).itemsize for dt in in_dtypes]
    mult = _sublane_multiple(*in_dtypes)

    if reduction in ("mean", "sum"):
        tm = _row_tile(rows, mult, in_sizes)
        total_blocks = _cdiv(rows, tm)
        ncores = 2 if total_blocks >= 2 else 1   # use both TCs on v7x
        bpc = _cdiv(total_blocks, ncores)        # blocks per core
        needs_mask = (ncores * bpc * tm) != rows
        acc_rows = _acc_rows(tm)
        last_block = total_blocks - 1

        def in_map(c, i):
            # Clamp so a (fully masked) trailing logical block never requests
            # a block index past the end of the array.
            return (jnp.minimum(c * bpc + i, last_block), 0)

        kernel = _make_sum_kernel(tm, acc_rows, rows, bpc, has_weight, needs_mask)
        partials = pl.pallas_call(
            kernel,
            out_shape=jax.ShapeDtypeStruct((ncores * acc_rows, LANES), jnp.float32),
            grid=(ncores, bpc),
            in_specs=[pl.BlockSpec((tm, LANES), in_map) for _ in operands],
            out_specs=pl.BlockSpec((acc_rows, LANES), lambda c, i: (c, 0)),
            compiler_params=pltpu.CompilerParams(
                dimension_semantics=("parallel", "arbitrary"),
                vmem_limit_bytes=_VMEM_LIMIT),
        )(*operands)
        total = jnp.sum(partials)                # single final cross-lane reduce
        loss = total / n_elems if reduction == "mean" else total
        loss = loss * scale_factor
        if lowest_loss_value is not None:
            loss = jnp.abs(loss - lowest_loss_value) + lowest_loss_value
        return loss

    elif reduction == "none":
        out_dtype = jnp.result_type(*in_dtypes)
        all_dtypes = in_dtypes + [out_dtype]
        mult_all = _sublane_multiple(*all_dtypes)
        tm = _row_tile(rows, mult_all, [jnp.dtype(dt).itemsize for dt in all_dtypes])
        total_blocks = _cdiv(rows, tm)
        kernel = _make_elem_kernel(has_weight, scale_factor, lowest_loss_value)
        out2d = pl.pallas_call(
            kernel,
            out_shape=jax.ShapeDtypeStruct((rows, LANES), out_dtype),
            grid=(total_blocks,),
            in_specs=[pl.BlockSpec((tm, LANES), lambda i: (i, 0)) for _ in operands],
            out_specs=pl.BlockSpec((tm, LANES), lambda i: (i, 0)),
            compiler_params=pltpu.CompilerParams(
                dimension_semantics=("parallel",),
                vmem_limit_bytes=_VMEM_LIMIT),
        )(*operands)
        return out2d.reshape(-1)[:n_elems].reshape(orig_shape)

    else:
        raise ValueError(f"unsupported reduction {reduction}")


if __name__ == "__main__":
    key = jax.random.PRNGKey(0)
    k1, k2, k3, k4, k5 = jax.random.split(key, 5)

    # Test 1: NCHW f32, weighted, default config (mean, scale=1, no floor).
    x = jax.random.normal(k1, (2, 4, 16, 16), dtype=jnp.float32)
    y = jax.random.normal(k2, (2, 4, 16, 16), dtype=jnp.float32)
    w = jax.random.uniform(k3, (2, 4, 16, 16), dtype=jnp.float32)
    out = jax.block_until_ready(l1_loss(x, y, weight=w, reduction="mean"))
    ref = jnp.mean(jnp.abs(x - y) * w)
    assert jnp.allclose(out, ref, rtol=1e-5, atol=1e-6), (out, ref)

    # Test 2: scale_factor + lowest_loss_value, no weight (weight-less kernel).
    out2 = jax.block_until_ready(
        l1_loss(x, y, scale_factor=2.0, reduction="mean", lowest_loss_value=0.5))
    ref2 = jnp.mean(jnp.abs(x - y)) * 2.0
    ref2 = jnp.abs(ref2 - 0.5) + 0.5
    assert jnp.allclose(out2, ref2, rtol=1e-5, atol=1e-6), (out2, ref2)

    # Test 3: reduction='none' with weight + fused scale/floor; dtype preserved.
    out3 = jax.block_until_ready(
        l1_loss(x, y, weight=w, scale_factor=0.5, reduction="none",
                lowest_loss_value=0.1))
    ref3 = jnp.abs(x - y) * w * 0.5
    ref3 = jnp.abs(ref3 - 0.1) + 0.1
    assert out3.shape == x.shape and out3.dtype == x.dtype
    assert jnp.allclose(out3, ref3, rtol=1e-5, atol=1e-6), "none-path mismatch"

    # Test 4: non-lane-aligned size -> exercises the pl.when tail masking.
    xs = jax.random.normal(k4, (3, 5, 7, 11), dtype=jnp.float32)
    ys = jax.random.normal(k5, (3, 5, 7, 11), dtype=jnp.float32)
    out4 = jax.block_until_ready(l1_loss(xs, ys, reduction="sum"))
    ref4 = jnp.sum(jnp.abs(xs - ys))
    assert jnp.allclose(out4, ref4, rtol=1e-5, atol=1e-5), (out4, ref4)

    # Test 5: bf16 inputs, odd block count -> exercises the 2-core split,
    # clamped index_map for the fully-masked trailing block, in-kernel cast.
    xb = jax.random.normal(k1, (2, 4, 184, 380), dtype=jnp.bfloat16)
    yb = jax.random.normal(k2, (2, 4, 184, 380), dtype=jnp.bfloat16)
    out5 = jax.block_until_ready(l1_loss(xb, yb, reduction="sum"))
    ref5 = jnp.sum(jnp.abs(xb.astype(jnp.float32) - yb.astype(jnp.float32)))
    assert jnp.allclose(out5, ref5, rtol=2e-3), (out5, ref5)

    print("KERNEL_OK")
</pallas_src>

<mosaic_0001>
module attributes {stable_mosaic.version = 11 : i64} {
  func.func @kernel(%arg0: i32, %arg1: i32, %arg2: memref<16x128xf32, #tpu.memory_space<vmem>>, %arg3: memref<16x128xf32, #tpu.memory_space<vmem>>, %arg4: memref<16x128xf32, #tpu.memory_space<vmem>>, %arg5: memref<16x128xf32, #tpu.memory_space<vmem>>) attributes {dimension_semantics = [#tpu.dimension_semantics<parallel>, #tpu.dimension_semantics<arbitrary>], iteration_bounds = array<i64: 1, 1>, scalar_prefetch = 0 : i64, scratch_operands = 0 : i64, tpu.core_type = #tpu.core_type<tc>, window_params = [{transform_indices = @transform_0, window_bounds = array<i64: 16, 128>}, {transform_indices = @transform_1, window_bounds = array<i64: 16, 128>}, {transform_indices = @transform_2, window_bounds = array<i64: 16, 128>}, {transform_indices = @transform_3, window_bounds = array<i64: 16, 128>}]} {
    %c0_i32 = arith.constant 0 : i32
    %0 = arith.cmpi eq, %arg1, %c0_i32 : i32
    %1 = arith.extui %0 : i1 to i32
    %c0_i32_0 = arith.constant 0 : i32
    %2 = arith.cmpi ne, %1, %c0_i32_0 : i32
    scf.if %2 {
      %cst_10 = arith.constant 0.000000e+00 : f32
      %14 = vector.broadcast %cst_10 : f32 to vector<16x128xf32>
      %c0_11 = arith.constant 0 : index
      %c0_12 = arith.constant 0 : index
      %15 = vector.load %arg5[%c0_11, %c0_12] : memref<16x128xf32, #tpu.memory_space<vmem>>, vector<16x128xf32>
      tpu.vector_store %arg5[%c0_11, %c0_12], %14 {strides = array<i32>} : memref<16x128xf32, #tpu.memory_space<vmem>>, vector<16x128xf32>,
    } else {
    }
    %c0 = arith.constant 0 : index
    %c0_1 = arith.constant 0 : index
    %3 = vector.load %arg2[%c0, %c0_1] : memref<16x128xf32, #tpu.memory_space<vmem>>, vector<16x128xf32>
    %c0_2 = arith.constant 0 : index
    %c0_3 = arith.constant 0 : index
    %4 = vector.load %arg3[%c0_2, %c0_3] : memref<16x128xf32, #tpu.memory_space<vmem>>, vector<16x128xf32>
    %5 = arith.subf %3, %4 : vector<16x128xf32>
    %6 = math.absf %5 : vector<16x128xf32>
    %c0_4 = arith.constant 0 : index
    %c0_5 = arith.constant 0 : index
    %7 = vector.load %arg4[%c0_4, %c0_5] : memref<16x128xf32, #tpu.memory_space<vmem>>, vector<16x128xf32>
    %8 = arith.mulf %6, %7 : vector<16x128xf32>
    %c0_6 = arith.constant 0 : index
    %c0_7 = arith.constant 0 : index
    %9 = vector.load %arg5[%c0_6, %c0_7] : memref<16x128xf32, #tpu.memory_space<vmem>>, vector<16x128xf32>
    %10 = vector.shape_cast %8 : vector<16x128xf32> to vector<1x16x128xf32>
    %cst = arith.constant dense<0.000000e+00> : vector<16x128xf32>
    %11 = vector.multi_reduction <add>, %10, %cst [0] : vector<1x16x128xf32> to vector<16x128xf32>
    %12 = arith.addf %9, %11 : vector<16x128xf32>
    %c0_8 = arith.constant 0 : index
    %c0_9 = arith.constant 0 : index
    %13 = vector.load %arg5[%c0_8, %c0_9] : memref<16x128xf32, #tpu.memory_space<vmem>>, vector<16x128xf32>
    tpu.vector_store %arg5[%c0_8, %c0_9], %12 {strides = array<i32>} : memref<16x128xf32, #tpu.memory_space<vmem>>, vector<16x128xf32>,
    return
  }
  func.func @transform_0(%arg0: i32, %arg1: i32) -> (i32, i32) {
    %c1_i32 = arith.constant 1 : i32
    %0 = arith.muli %arg0, %c1_i32 : i32
    %1 = arith.addi %0, %arg1 : i32
    %c0_i32 = arith.constant 0 : i32
    %2 = arith.minsi %1, %c0_i32 : i32
    %c0_i32_0 = arith.constant 0 : i32
    %c0_i32_1 = arith.constant 0 : i32
    return %2, %c0_i32_0 : i32, i32
  }
  func.func @transform_1(%arg0: i32, %arg1: i32) -> (i32, i32) {
    %c1_i32 = arith.constant 1 : i32
    %0 = arith.muli %arg0, %c1_i32 : i32
    %1 = arith.addi %0, %arg1 : i32
    %c0_i32 = arith.constant 0 : i32
    %2 = arith.minsi %1, %c0_i32 : i32
    %c0_i32_0 = arith.constant 0 : i32
    %c0_i32_1 = arith.constant 0 : i32
    return %2, %c0_i32_0 : i32, i32
  }
  func.func @transform_2(%arg0: i32, %arg1: i32) -> (i32, i32) {
    %c1_i32 = arith.constant 1 : i32
    %0 = arith.muli %arg0, %c1_i32 : i32
    %1 = arith.addi %0, %arg1 : i32
    %c0_i32 = arith.constant 0 : i32
    %2 = arith.minsi %1, %c0_i32 : i32
    %c0_i32_0 = arith.constant 0 : i32
    %c0_i32_1 = arith.constant 0 : i32
    return %2, %c0_i32_0 : i32, i32
  }
  func.func @transform_3(%arg0: i32, %arg1: i32) -> (i32, i32) {
    %c0_i32 = arith.constant 0 : i32
    %c0_i32_0 = arith.constant 0 : i32
    return %arg0, %c0_i32 : i32, i32
  }
}

</mosaic_0001>

<llo_original>
// kernel: tpu_custom_call.1
$region0: #{tpu_custom_call.1}
  #allocation0 [shape = 'u32[]', space=smem, size = 0x4, offset = 0x4, fixed_abs, tag = 'smem constant byte address 0x4 - core index']
  #allocation1 [shape = 'u32[144,128]{1,0:T(1,128)}', space=vmem, size = 0x12000, scoped, tag = 'internal scratch']
  %s0 = inlined_call_operand.hbm [shape: f32[16,128], index: 0, kind: input, shape index: {}]
  %s1 = inlined_call_operand.hbm [shape: f32[16,128], index: 1, kind: input, shape index: {}]
  %s2 = inlined_call_operand.hbm [shape: f32[16,128], index: 2, kind: input, shape index: {}]
  %s3 = inlined_call_operand.hbm [shape: f32[16,128], index: 3, kind: output, shape index: {}]
  %s4 = sld [smem:[#allocation0]]
  $region38: #{tpu_custom_call.1} parent=0
    _
  %s6 = ssub.s32 1, %s4
  %s7 = scalar_select 0, %s6, %s4
  $region1: #{tpu_custom_call.1} parent=0
    #allocation2 [shape = 'u8[8192]{0}', space=vmem, size = 0x2000, scoped, tag = 'input window, operand 0, single buffered']
    #allocation3 [shape = 's32[1]{0}', space=sflag, size = 0x4, scoped, tag = 'scoped memory for tpu_custom_call.1']
    #allocation4 [shape = 's32[1]{0}', space=sflag, size = 0x4, scoped, tag = 'scoped memory for tpu_custom_call.1']
    #allocation5 [shape = 'u8[8192]{0}', space=vmem, size = 0x2000, scoped, tag = 'input window, operand 1, single buffered']
    #allocation6 [shape = 's32[1]{0}', space=sflag, size = 0x4, scoped, tag = 'scoped memory for tpu_custom_call.1']
    #allocation7 [shape = 'u8[8192]{0}', space=vmem, size = 0x2000, scoped, tag = 'input window, operand 2, single buffered']
    #allocation8 [shape = 'u8[8192]{0}', space=vmem, size = 0x2000, scoped, tag = 'output window, operand 0, single buffered']
    %8 = vsyncpa [#allocation3], 0
    %9 = vsyncpa [#allocation6], 0
    %10 = vsyncpa [#allocation4], 0
    // Predicated region
    $region2: #{tpu_custom_call.1} parent=1 // pred_check
      _
    $region3: #{tpu_custom_call.1} parent=1 // pred_check_branch
      %12 = sbr.rel (0) target = $region5
    $region4: #{tpu_custom_call.1} parent=1 // pred_region
      %s13 = sadd.s32 0, 0
      %p14 = scmp.lt.s32.totalorder %s13, 0
      %s15 = scalar_select %p14, %s13, 0
      %s16 = smul.u32 2, %s15
      %s18 = ssub.s32 256, 256
      %19 = vsyncadd [#allocation3], %s18
      %s20 = smul.addr %s16, 128
      %s21 = scalar_lea.hbm %s0, %s20
      %s22 = sshll.u32 [#allocation2], 4
      %s23 = int_to_ptr.vmem [resolvable:$true] %s22
      %28 = dma.hbm_to_vmem [thread:$0]  %s21, 256, %s23, [#allocation3], 128, 128, 8
    $region5: #{tpu_custom_call.1} parent=1 // pred_fallthru
      _
    // Predicated region
    $region6: #{tpu_custom_call.1} parent=1 // pred_check
      _
    $region7: #{tpu_custom_call.1} parent=1 // pred_check_branch
      %30 = sbr.rel (0) target = $region9
    $region8: #{tpu_custom_call.1} parent=1 // pred_region
      %s31 = sadd.s32 0, 0
      %p32 = scmp.lt.s32.totalorder %s31, 0
      %s33 = scalar_select %p32, %s31, 0
      %s34 = smul.u32 2, %s33
      %s36 = ssub.s32 256, 256
      %37 = vsyncadd [#allocation6], %s36
      %s38 = smul.addr %s34, 128
      %s39 = scalar_lea.hbm %s1, %s38
      %s40 = sshll.u32 [#allocation5], 4
      %s41 = int_to_ptr.vmem [resolvable:$true] %s40
      %46 = dma.hbm_to_vmem [thread:$0]  %s39, 256, %s41, [#allocation6], 128, 128, 8
    $region9: #{tpu_custom_call.1} parent=1 // pred_fallthru
      _
    // Predicated region
    $region10: #{tpu_custom_call.1} parent=1 // pred_check
      _
    $region11: #{tpu_custom_call.1} parent=1 // pred_check_branch
      %48 = sbr.rel (0) target = $region13
    $region12: #{tpu_custom_call.1} parent=1 // pred_region
      %s49 = sadd.s32 0, 0
      %p50 = scmp.lt.s32.totalorder %s49, 0
      %s51 = scalar_select %p50, %s49, 0
      %s52 = smul.u32 2, %s51
      %s54 = ssub.s32 256, 256
      %55 = vsyncadd [#allocation6], %s54
      %s56 = smul.addr %s52, 128
      %s57 = scalar_lea.hbm %s2, %s56
      %s58 = sshll.u32 [#allocation7], 4
      %s59 = int_to_ptr.vmem [resolvable:$true] %s58
      %64 = dma.hbm_to_vmem [thread:$0]  %s57, 256, %s59, [#allocation6], 128, 128, 8
    $region13: #{tpu_custom_call.1} parent=1 // pred_fallthru
      _
    // Predicated region
    $region14: #{tpu_custom_call.1} parent=1 // pred_check
      _
    $region15: #{tpu_custom_call.1} parent=1 // pred_check_branch
      %66 = sbr.rel (0) target = $region17
    $region16: #{tpu_custom_call.1} parent=1 // pred_region
      %67 = dma.done [#allocation3], 256
    $region17: #{tpu_custom_call.1} parent=1 // pred_fallthru
      _
    // Predicated region
    $region18: #{tpu_custom_call.1} parent=1 // pred_check
      _
    $region19: #{tpu_custom_call.1} parent=1 // pred_check_branch
      %69 = sbr.rel (0) target = $region21
    $region20: #{tpu_custom_call.1} parent=1 // pred_region
      %70 = dma.done [#allocation6], 256
    $region21: #{tpu_custom_call.1} parent=1 // pred_fallthru
      _
    // Predicated region
    $region22: #{tpu_custom_call.1} parent=1 // pred_check
      _
    $region23: #{tpu_custom_call.1} parent=1 // pred_check_branch
      %72 = sbr.rel (0) target = $region25
    $region24: #{tpu_custom_call.1} parent=1 // pred_region
      %73 = dma.done [#allocation6], 256
    $region25: #{tpu_custom_call.1} parent=1 // pred_fallthru
      _
    %s74 = sadd.s32 0, 0
    %p75 = scmp.lt.s32.totalorder %s74, 0
    %s76 = scalar_select %p75, %s74, 0
    %s77 = smul.u32 2, %s76
    %s78 = sadd.s32 0, 0
    %p79 = scmp.lt.s32.totalorder %s78, 0
    %s80 = scalar_select %p79, %s78, 0
    %s81 = smul.u32 2, %s80
    %s82 = sadd.s32 0, 0
    %p83 = scmp.lt.s32.totalorder %s82, 0
    %s84 = scalar_select %p83, %s82, 0
    %s85 = smul.u32 2, %s84
    %p86 = scmp.eq.s32.totalorder 0, 0
    // Predicated region
    $region26: #{tpu_custom_call.1} parent=1 // pred_check
      %p87 = pneg %p86
    $region27: #{tpu_custom_call.1} parent=1 // pred_check_branch
      %89 = sbr.rel (%p87) target = $region29
    $region28: #{tpu_custom_call.1} parent=1 // pred_region
      %90 = vst [vmem:[#allocation8] sm:$0xff] 0.0
      %91 = vst [vmem:[#allocation8 + $0x8] sm:$0xff] 0.0
    $region29: #{tpu_custom_call.1} parent=1 // pred_fallthru
      _
    %v92 = vld [vmem:[#allocation2] sm:$0xff]
    %v93 = vld [vmem:[#allocation2 + $0x8] sm:$0xff]
    %v94 = vld [vmem:[#allocation5] sm:$0xff]
    %v95 = vld [vmem:[#allocation5 + $0x8] sm:$0xff]
    %v96 = vsub.f32 %v92, %v94
    %v97 = vsub.f32 %v93, %v95
    %v98 = vand.u32 2147483647, %v96
    %v99 = vand.u32 2147483647, %v97
    %v100 = vld [vmem:[#allocation7] sm:$0xff]
    %v101 = vld [vmem:[#allocation7 + $0x8] sm:$0xff]
    %v102 = vmul.f32 %v98, %v100
    %v103 = vmul.f32 %v99, %v101
    %v104 = vld [vmem:[#allocation8] sm:$0xff]
    %v105 = vld [vmem:[#allocation8 + $0x8] sm:$0xff]
    %v106 = vadd.f32 %v102, 0.0
    %v107 = vadd.f32 %v103, 0.0
    %v108 = vadd.f32 %v104, %v106
    %v109 = vadd.f32 %v105, %v107
    %110 = vst [vmem:[#allocation8] sm:$0xff] %v108
    %111 = vst [vmem:[#allocation8 + $0x8] sm:$0xff] %v109
    // Predicated region
    $region30: #{tpu_custom_call.1} parent=1 // pred_check
      _
    $region31: #{tpu_custom_call.1} parent=1 // pred_check_branch
      %113 = sbr.rel (0) target = $region33
    $region32: #{tpu_custom_call.1} parent=1 // pred_region
      %s115 = ssub.s32 256, 256
      %116 = vsyncadd [#allocation4], %s115
      %s117 = sshll.u32 [#allocation8], 4
      %s118 = int_to_ptr.vmem [resolvable:$true] %s117
      %123 = dma.vmem_to_hbm [thread:$0]  %s118, 256, %s3, [#allocation4], 128, 128, 8
    $region33: #{tpu_custom_call.1} parent=1 // pred_fallthru
      _
    // Predicated region
    $region34: #{tpu_custom_call.1} parent=1 // pred_check
      _
    $region35: #{tpu_custom_call.1} parent=1 // pred_check_branch
      %125 = sbr.rel (0) target = $region37
    $region36: #{tpu_custom_call.1} parent=1 // pred_region
      %126 = dma.done [#allocation4], 256
    $region37: #{tpu_custom_call.1} parent=1 // pred_fallthru
      _
    %127 = vsyncpa [#allocation3], 1
    %128 = vsyncpa [#allocation6], 1
    %129 = vsyncpa [#allocation4], 1

</llo_original>
